<compile_context>
chip_gen: v6e
topology: v6e:2x2x1
jax: 0.10.0
libtpu: 0.0.40
codegen_flags: <defaults>
</compile_context>

<pallas_src>
import jax
import jax.numpy as jnp
from jax.experimental import pallas as pl
from jax.experimental.pallas import tpu as pltpu


def _round_up(x, m):
    return ((x + m - 1) // m) * m


def _ca_kernel(emb_ref, wa_ref, wg_ref, ba_ref, bg_ref, eps_ref,
               c_ref, x_ref):
    """One batch tile: fused Linear + GLU + reparameterization."""
    emb = emb_ref[...]                                         # [tm, D_in]

    # Two pre-split matmuls instead of one matmul + in-vreg lane split.
    a = jnp.dot(emb, wa_ref[...],
                preferred_element_type=jnp.float32) + ba_ref[...]   # [tm, 2C]
    g = jnp.dot(emb, wg_ref[...],
                preferred_element_type=jnp.float32) + bg_ref[...]   # [tm, 2C]

    x = a * jax.nn.sigmoid(g)                                  # GLU, [tm, 2C]

    c = x.shape[1] // 2
    mean = x[:, :c]                                            # [tm, C]
    log_var = x[:, c:]                                         # [tm, C]

    std = jnp.exp(0.5 * log_var)
    c_code = eps_ref[...] * std + mean                         # reparam trick

    x_ref[...] = x.astype(x_ref.dtype)
    c_ref[...] = c_code.astype(c_ref.dtype)


def conditioning_augmentation(embedding, w, b, eps, *, block_b=512):
    """embedding: [B, D_in], w: [D_in, 4C], b: [4C], eps: [B, C].

    Returns (c_code [B, C], mean [B, C], log_var [B, C]).
    """
    B, d_in = embedding.shape
    four_c = w.shape[1]
    two_c = four_c // 2
    c = two_c // 2

    # Wrapper-side (one-time) GLU weight split: a-path and gate-path.
    w_a = w[:, :two_c]
    w_g = w[:, two_c:]
    b_a = b[:two_c].reshape(1, two_c)
    b_g = b[two_c:].reshape(1, two_c)

    # Batch tiling: sublane-aligned tile, pad batch to a tile multiple.
    tm = min(block_b, _round_up(B, 8))
    B_pad = _round_up(B, tm)
    if B_pad != B:
        embedding = jnp.pad(embedding, ((0, B_pad - B), (0, 0)))
        eps = jnp.pad(eps, ((0, B_pad - B), (0, 0)))
    grid = (B_pad // tm,)

    out_shapes = (
        jax.ShapeDtypeStruct((B_pad, c), jnp.float32),       # c_code
        jax.ShapeDtypeStruct((B_pad, two_c), jnp.float32),   # x = [mean|logvar]
    )

    grid_spec = pltpu.PrefetchScalarGridSpec(
        num_scalar_prefetch=0,
        grid=grid,
        in_specs=[
            pl.BlockSpec((tm, d_in), lambda i: (i, 0)),      # embedding tile
            pl.BlockSpec((d_in, two_c), lambda i: (0, 0)),   # W_a (resident)
            pl.BlockSpec((d_in, two_c), lambda i: (0, 0)),   # W_g (resident)
            pl.BlockSpec((1, two_c), lambda i: (0, 0)),      # b_a (resident)
            pl.BlockSpec((1, two_c), lambda i: (0, 0)),      # b_g (resident)
            pl.BlockSpec((tm, c), lambda i: (i, 0)),         # eps tile
        ],
        out_specs=(
            pl.BlockSpec((tm, c), lambda i: (i, 0)),
            pl.BlockSpec((tm, two_c), lambda i: (i, 0)),
        ),
    )

    c_code, x = pl.pallas_call(
        _ca_kernel,
        out_shape=out_shapes,
        grid_spec=grid_spec,
        compiler_params=pltpu.CompilerParams(
            dimension_semantics=("parallel",)),
    )(embedding, w_a, w_g, b_a, b_g, eps)

    # Static slices in the wrapper (lane-dense kernel outputs, free in XLA).
    c_code = c_code[:B]
    mean = x[:B, :c]
    log_var = x[:B, c:]
    return c_code, mean, log_var


if __name__ == "__main__":
    # Small shapes consistent with the module:
    #   embedding_dim = 32, condition_dim = 16, bilingual = False
    #   => in_dim = 32, fc output = condition_dim * 2 * 2 = 64
    batch = 4
    embedding_dim = 32
    condition_dim = 16
    in_dim = embedding_dim           # bilingual=False
    out_dim = condition_dim * 2 * 2  # 64

    key = jax.random.PRNGKey(0)
    k_emb, k_w, k_b, k_eps = jax.random.split(key, 4)

    embedding = jax.random.normal(k_emb, (batch, in_dim), dtype=jnp.float32)
    # Deterministic "parameter init" (synthetic weights, no checkpoint load)
    w = jax.random.normal(k_w, (in_dim, out_dim), dtype=jnp.float32) * 0.05
    b = jax.random.normal(k_b, (out_dim,), dtype=jnp.float32) * 0.01
    # eps ~ N(0, 1): drawn once, deterministically, in the wrapper
    eps = jax.random.normal(k_eps, (batch, condition_dim), dtype=jnp.float32)

    c_code, mean, log_var = conditioning_augmentation(embedding, w, b, eps)
    jax.block_until_ready((c_code, mean, log_var))

    # Pure-JAX reference check
    h_ref = embedding @ w + b
    glu_ref = h_ref[:, :out_dim // 2] * jax.nn.sigmoid(h_ref[:, out_dim // 2:])
    mean_ref = glu_ref[:, :condition_dim]
    logvar_ref = glu_ref[:, condition_dim:]
    c_ref = eps * jnp.exp(0.5 * logvar_ref) + mean_ref

    assert mean.shape == (batch, condition_dim)
    assert log_var.shape == (batch, condition_dim)
    assert c_code.shape == (batch, condition_dim)
    assert jnp.allclose(mean, mean_ref, atol=1e-5)
    assert jnp.allclose(log_var, logvar_ref, atol=1e-5)
    assert jnp.allclose(c_code, c_ref, atol=1e-5)

    print("KERNEL_OK")
</pallas_src>

<mosaic_0001>
module attributes {stable_mosaic.version = 11 : i64} {
  func.func @_ca_kernel(%arg0: i32, %arg1: memref<8x32xf32, #tpu.memory_space<vmem>>, %arg2: memref<32x32xf32, #tpu.memory_space<vmem>>, %arg3: memref<32x32xf32, #tpu.memory_space<vmem>>, %arg4: memref<1x32xf32, #tpu.memory_space<vmem>>, %arg5: memref<1x32xf32, #tpu.memory_space<vmem>>, %arg6: memref<8x16xf32, #tpu.memory_space<vmem>>, %arg7: memref<8x16xf32, #tpu.memory_space<vmem>>, %arg8: memref<8x32xf32, #tpu.memory_space<vmem>>) attributes {dimension_semantics = [#tpu.dimension_semantics<parallel>], iteration_bounds = array<i64: 1>, scalar_prefetch = 0 : i64, scratch_operands = 0 : i64, tpu.core_type = #tpu.core_type<tc>, window_params = [{transform_indices = @transform_0, window_bounds = array<i64: 8, 32>}, {pipeline_mode = #tpu.pipeline_mode<synchronous>, transform_indices = @transform_1, window_bounds = array<i64: 32, 32>}, {pipeline_mode = #tpu.pipeline_mode<synchronous>, transform_indices = @transform_2, window_bounds = array<i64: 32, 32>}, {pipeline_mode = #tpu.pipeline_mode<synchronous>, transform_indices = @transform_3, window_bounds = array<i64: 1, 32>}, {pipeline_mode = #tpu.pipeline_mode<synchronous>, transform_indices = @transform_4, window_bounds = array<i64: 1, 32>}, {transform_indices = @transform_5, window_bounds = array<i64: 8, 16>}, {transform_indices = @transform_6, window_bounds = array<i64: 8, 16>}, {transform_indices = @transform_7, window_bounds = array<i64: 8, 32>}]} {
    %c0 = arith.constant 0 : index
    %c0_0 = arith.constant 0 : index
    %0 = vector.load %arg1[%c0, %c0_0] : memref<8x32xf32, #tpu.memory_space<vmem>>, vector<8x32xf32>
    %c0_1 = arith.constant 0 : index
    %c0_2 = arith.constant 0 : index
    %1 = vector.load %arg2[%c0_1, %c0_2] : memref<32x32xf32, #tpu.memory_space<vmem>>, vector<32x32xf32>
    %cst = arith.constant dense<0.000000e+00> : vector<8x32xf32>
    %2 = tpu.matmul %0, %1, %cst {dimension_numbers = #tpu.dot_dimension_numbers<[1], [0], [0], [1], [0, 0, 1, 1], [], []>} : vector<8x32xf32>, vector<32x32xf32>, vector<8x32xf32> -> vector<8x32xf32>
    %c0_3 = arith.constant 0 : index
    %c0_4 = arith.constant 0 : index
    %3 = vector.load %arg4[%c0_3, %c0_4] : memref<1x32xf32, #tpu.memory_space<vmem>>, vector<1x32xf32>
    %4 = vector.broadcast %3 : vector<1x32xf32> to vector<8x32xf32>
    %5 = arith.addf %2, %4 : vector<8x32xf32>
    %c0_5 = arith.constant 0 : index
    %c0_6 = arith.constant 0 : index
    %6 = vector.load %arg3[%c0_5, %c0_6] : memref<32x32xf32, #tpu.memory_space<vmem>>, vector<32x32xf32>
    %cst_7 = arith.constant dense<0.000000e+00> : vector<8x32xf32>
    %7 = tpu.matmul %0, %6, %cst_7 {dimension_numbers = #tpu.dot_dimension_numbers<[1], [0], [0], [1], [0, 0, 1, 1], [], []>} : vector<8x32xf32>, vector<32x32xf32>, vector<8x32xf32> -> vector<8x32xf32>
    %c0_8 = arith.constant 0 : index
    %c0_9 = arith.constant 0 : index
    %8 = vector.load %arg5[%c0_8, %c0_9] : memref<1x32xf32, #tpu.memory_space<vmem>>, vector<1x32xf32>
    %9 = vector.broadcast %8 : vector<1x32xf32> to vector<8x32xf32>
    %10 = arith.addf %7, %9 : vector<8x32xf32>
    %11 = arith.negf %10 : vector<8x32xf32>
    %12 = math.exp %11 : vector<8x32xf32>
    %cst_10 = arith.constant 1.000000e+00 : f32
    %13 = vector.broadcast %cst_10 : f32 to vector<8x32xf32>
    %14 = arith.addf %13, %12 : vector<8x32xf32>
    %15 = arith.divf %13, %14 : vector<8x32xf32>
    %16 = arith.mulf %5, %15 : vector<8x32xf32>
    %17 = vector.extract_strided_slice %16 {offsets = [0, 0], sizes = [8, 16], strides = [1, 1]} : vector<8x32xf32> to vector<8x16xf32>
    %18 = vector.extract_strided_slice %16 {offsets = [0, 16], sizes = [8, 16], strides = [1, 1]} : vector<8x32xf32> to vector<8x16xf32>
    %cst_11 = arith.constant 5.000000e-01 : f32
    %19 = vector.broadcast %cst_11 : f32 to vector<8x16xf32>
    %20 = arith.mulf %19, %18 : vector<8x16xf32>
    %21 = math.exp %20 : vector<8x16xf32>
    %c0_12 = arith.constant 0 : index
    %c0_13 = arith.constant 0 : index
    %22 = vector.load %arg6[%c0_12, %c0_13] : memref<8x16xf32, #tpu.memory_space<vmem>>, vector<8x16xf32>
    %23 = arith.mulf %22, %21 : vector<8x16xf32>
    %24 = arith.addf %23, %17 : vector<8x16xf32>
    %c0_14 = arith.constant 0 : index
    %c0_15 = arith.constant 0 : index
    %25 = vector.load %arg8[%c0_14, %c0_15] : memref<8x32xf32, #tpu.memory_space<vmem>>, vector<8x32xf32>
    tpu.vector_store %arg8[%c0_14, %c0_15], %16 {strides = array<i32>} : memref<8x32xf32, #tpu.memory_space<vmem>>, vector<8x32xf32>,
    %c0_16 = arith.constant 0 : index
    %c0_17 = arith.constant 0 : index
    %26 = vector.load %arg7[%c0_16, %c0_17] : memref<8x16xf32, #tpu.memory_space<vmem>>, vector<8x16xf32>
    tpu.vector_store %arg7[%c0_16, %c0_17], %24 {strides = array<i32>} : memref<8x16xf32, #tpu.memory_space<vmem>>, vector<8x16xf32>,
    return
  }
  func.func @transform_0(%arg0: i32) -> (i32, i32) {
    %c0_i32 = arith.constant 0 : i32
    %c0_i32_0 = arith.constant 0 : i32
    return %arg0, %c0_i32 : i32, i32
  }
  func.func @transform_1(%arg0: i32) -> (i32, i32) {
    %c0_i32 = arith.constant 0 : i32
    %c0_i32_0 = arith.constant 0 : i32
    %c0_i32_1 = arith.constant 0 : i32
    return %c0_i32, %c0_i32_0 : i32, i32
  }
  func.func @transform_2(%arg0: i32) -> (i32, i32) {
    %c0_i32 = arith.constant 0 : i32
    %c0_i32_0 = arith.constant 0 : i32
    %c0_i32_1 = arith.constant 0 : i32
    return %c0_i32, %c0_i32_0 : i32, i32
  }
  func.func @transform_3(%arg0: i32) -> (i32, i32) {
    %c0_i32 = arith.constant 0 : i32
    %c0_i32_0 = arith.constant 0 : i32
    %c0_i32_1 = arith.constant 0 : i32
    return %c0_i32, %c0_i32_0 : i32, i32
  }
  func.func @transform_4(%arg0: i32) -> (i32, i32) {
    %c0_i32 = arith.constant 0 : i32
    %c0_i32_0 = arith.constant 0 : i32
    %c0_i32_1 = arith.constant 0 : i32
    return %c0_i32, %c0_i32_0 : i32, i32
  }
  func.func @transform_5(%arg0: i32) -> (i32, i32) {
    %c0_i32 = arith.constant 0 : i32
    %c0_i32_0 = arith.constant 0 : i32
    return %arg0, %c0_i32 : i32, i32
  }
  func.func @transform_6(%arg0: i32) -> (i32, i32) {
    %c0_i32 = arith.constant 0 : i32
    %c0_i32_0 = arith.constant 0 : i32
    return %arg0, %c0_i32 : i32, i32
  }
  func.func @transform_7(%arg0: i32) -> (i32, i32) {
    %c0_i32 = arith.constant 0 : i32
    %c0_i32_0 = arith.constant 0 : i32
    return %arg0, %c0_i32 : i32, i32
  }
}

</mosaic_0001>

<llo_original>
// kernel: tpu_custom_call.1
$region0: #{tpu_custom_call.1}
  #allocation0 [shape = 'u32[]', space=smem, size = 0x4, offset = 0x4, fixed_abs, tag = 'smem constant byte address 0x4 - core index']
  #allocation1 [shape = 'u32[144,128]{1,0:T(1,128)}', space=vmem, size = 0x12000, scoped, tag = 'internal scratch']
  %s0 = inlined_call_operand.hbm [shape: f32[8,32], index: 0, kind: input, shape index: {}]
  %s1 = inlined_call_operand.hbm [shape: f32[32,32], index: 1, kind: input, shape index: {}]
  %s2 = inlined_call_operand.hbm [shape: f32[32,32], index: 2, kind: input, shape index: {}]
  %s3 = inlined_call_operand.vmem [shape: f32[1,32], index: 3, kind: input, shape index: {}]
  %s4 = inlined_call_operand.hbm [shape: f32[1,32], index: 4, kind: input, shape index: {}]
  %s5 = inlined_call_operand.vmem [shape: f32[8,16], index: 5, kind: input, shape index: {}]
  %s6 = inlined_call_operand.hbm [shape: f32[8,16], index: 6, kind: output, shape index: {0}]
  %s7 = inlined_call_operand.hbm [shape: f32[8,32], index: 7, kind: output, shape index: {1}]
  %8 = xla_tuple %s6, %s7
  %s9 = sld [smem:[#allocation0]]
  $region58: #{tpu_custom_call.1} parent=0
    _
  %s11 = ssub.s32 1, %s9
  %s12 = scalar_select 0, %s11, %s9
  $region1: #{tpu_custom_call.1} parent=0
    #allocation2 [shape = 'u8[4096]{0}', space=vmem, size = 0x1000, scoped, tag = 'input window, operand 0, single buffered']
    #allocation3 [shape = 's32[1]{0}', space=sflag, size = 0x4, scoped, tag = 'scoped memory for tpu_custom_call.1']
    #allocation4 [shape = 's32[1]{0}', space=sflag, size = 0x4, scoped, tag = 'scoped memory for tpu_custom_call.1']
    #allocation5 [shape = 'u8[16384]{0}', space=vmem, size = 0x4000, scoped, tag = 'input window, operand 1, single buffered']
    #allocation6 [shape = 's32[1]{0}', space=sflag, size = 0x4, scoped, tag = 'scoped memory for tpu_custom_call.1']
    #allocation7 [shape = 'u8[16384]{0}', space=vmem, size = 0x4000, scoped, tag = 'input window, operand 2, single buffered']
    #allocation8 [shape = 'u8[512]{0}', space=vmem, size = 0x400, scoped, tag = 'input window, operand 4, single buffered']
    #allocation9 [shape = 's32[1]{0}', space=sflag, size = 0x4, scoped, tag = 'scoped memory for tpu_custom_call.1']
    #allocation10 [shape = 'u8[4096]{0}', space=vmem, size = 0x1000, scoped, tag = 'output window, operand 0, single buffered']
    #allocation11 [shape = 'u8[4096]{0}', space=vmem, size = 0x1000, scoped, tag = 'output window, operand 1, single buffered']
    #allocation12 [shape = 's32[1]{0}', space=sflag, size = 0x4, scoped, tag = 'scoped memory for tpu_custom_call.1']
    %13 = vsyncpa [#allocation3], 0
    %14 = vsyncpa [#allocation6], 0
    %15 = vsyncpa [#allocation9], 0
    %16 = vsyncpa [#allocation4], 0
    %17 = vsyncpa [#allocation12], 0
    // Predicated region
    $region2: #{tpu_custom_call.1} parent=1 // pred_check
      _
    $region3: #{tpu_custom_call.1} parent=1 // pred_check_branch
      %19 = sbr.rel (0) target = $region5
    $region4: #{tpu_custom_call.1} parent=1 // pred_region
      %s21 = ssub.s32 128, 128
      %22 = vsyncadd [#allocation3], %s21
      %s24 = sshll.u32 [#allocation2], 4
      %s25 = int_to_ptr.vmem [resolvable:$true] %s24
      %27 = dma.hbm_to_vmem [thread:$0]  %s0, 128, %s25, [#allocation3]
    $region5: #{tpu_custom_call.1} parent=1 // pred_fallthru
      _
    // Predicated region
    $region6: #{tpu_custom_call.1} parent=1 // pred_check
      _
    $region7: #{tpu_custom_call.1} parent=1 // pred_check_branch
      %29 = sbr.rel (0) target = $region9
    $region8: #{tpu_custom_call.1} parent=1 // pred_region
      %s31 = ssub.s32 512, 512
      %32 = vsyncadd [#allocation6], %s31
      %s33 = sshll.u32 [#allocation5], 4
      %s34 = int_to_ptr.vmem [resolvable:$true] %s33
      %39 = dma.hbm_to_vmem [thread:$0]  %s1, 512, %s34, [#allocation6], 128, 128, 8
    $region9: #{tpu_custom_call.1} parent=1 // pred_fallthru
      _
    // Predicated region
    $region10: #{tpu_custom_call.1} parent=1 // pred_check
      _
    $region11: #{tpu_custom_call.1} parent=1 // pred_check_branch
      %41 = sbr.rel (0) target = $region13
    $region12: #{tpu_custom_call.1} parent=1 // pred_region
      %s43 = ssub.s32 512, 512
      %44 = vsyncadd [#allocation6], %s43
      %s45 = sshll.u32 [#allocation7], 4
      %s46 = int_to_ptr.vmem [resolvable:$true] %s45
      %51 = dma.hbm_to_vmem [thread:$0]  %s2, 512, %s46, [#allocation6], 128, 128, 8
    $region13: #{tpu_custom_call.1} parent=1 // pred_fallthru
      _
    // Predicated region
    $region14: #{tpu_custom_call.1} parent=1 // pred_check
      _
    $region15: #{tpu_custom_call.1} parent=1 // pred_check_branch
      %53 = sbr.rel (0) target = $region17
    $region16: #{tpu_custom_call.1} parent=1 // pred_region
      _
    $region17: #{tpu_custom_call.1} parent=1 // pred_fallthru
      _
    // Predicated region
    $region18: #{tpu_custom_call.1} parent=1 // pred_check
      _
    $region19: #{tpu_custom_call.1} parent=1 // pred_check_branch
      %55 = sbr.rel (0) target = $region21
    $region20: #{tpu_custom_call.1} parent=1 // pred_region
      %s57 = ssub.s32 16, 16
      %58 = vsyncadd [#allocation9], %s57
      %s60 = sshll.u32 [#allocation8], 4
      %s61 = int_to_ptr.vmem [resolvable:$true] %s60
      %63 = dma.hbm_to_vmem [thread:$0]  %s4, 16, %s61, [#allocation9]
    $region21: #{tpu_custom_call.1} parent=1 // pred_fallthru
      _
    // Predicated region
    $region22: #{tpu_custom_call.1} parent=1 // pred_check
      _
    $region23: #{tpu_custom_call.1} parent=1 // pred_check_branch
      %65 = sbr.rel (0) target = $region25
    $region24: #{tpu_custom_call.1} parent=1 // pred_region
      _
    $region25: #{tpu_custom_call.1} parent=1 // pred_fallthru
      _
    // Predicated region
    $region26: #{tpu_custom_call.1} parent=1 // pred_check
      _
    $region27: #{tpu_custom_call.1} parent=1 // pred_check_branch
      %67 = sbr.rel (0) target = $region29
    $region28: #{tpu_custom_call.1} parent=1 // pred_region
      %68 = dma.done [#allocation3], 128
    $region29: #{tpu_custom_call.1} parent=1 // pred_fallthru
      _
    // Predicated region
    $region30: #{tpu_custom_call.1} parent=1 // pred_check
      _
    $region31: #{tpu_custom_call.1} parent=1 // pred_check_branch
      %70 = sbr.rel (0) target = $region33
    $region32: #{tpu_custom_call.1} parent=1 // pred_region
      %71 = dma.done [#allocation6], 512
    $region33: #{tpu_custom_call.1} parent=1 // pred_fallthru
      _
    // Predicated region
    $region34: #{tpu_custom_call.1} parent=1 // pred_check
      _
    $region35: #{tpu_custom_call.1} parent=1 // pred_check_branch
      %73 = sbr.rel (0) target = $region37
    $region36: #{tpu_custom_call.1} parent=1 // pred_region
      %74 = dma.done [#allocation6], 512
    $region37: #{tpu_custom_call.1} parent=1 // pred_fallthru
      _
    // Predicated region
    $region38: #{tpu_custom_call.1} parent=1 // pred_check
      _
    $region39: #{tpu_custom_call.1} parent=1 // pred_check_branch
      %76 = sbr.rel (0) target = $region41
    $region40: #{tpu_custom_call.1} parent=1 // pred_region
      %77 = dma.done [#allocation9], 16
    $region41: #{tpu_custom_call.1} parent=1 // pred_fallthru
      _
    %v78 = vld [vmem:[#allocation2] sm:$0xff]
    %v79 = vld [vmem:[#allocation5] sm:$0xff]
    %v80 = vld [vmem:[#allocation5 + $0x8] sm:$0xff]
    %v81 = vld [vmem:[#allocation5 + $0x10] sm:$0xff]
    %v82 = vld [vmem:[#allocation5 + $0x18] sm:$0xff]
    %v83 = vld [vmem:[%s3] sm:$0x1]
    %v85 = vlaneseq
    %v86 = vshrl.u32 %v85, 7
    %v87 = vsub.s32 0, %v86
    %v88 = vrot.slane %v83, %v87
    %vm90 = vcmask 261120
    %v92 = vsel %vm90, %v78, 0
    %94 = vmatprep.subr.mxu0 0.0
    %95 = vmatpush1.msra.mxu0 0.0
    %96 = vmatprep.subr.mxu0 0.0
    %97 = vmatpush1.msra.mxu0 0.0
    %98 = vmatprep.subr.mxu0 0.0
    %99 = vmatpush1.msra.mxu0 0.0
    %100 = vmatprep.subr.mxu0 0.0
    %101 = vmatpush1.msra.mxu0 0.0
    %102 = vmatprep.subr.mxu0 0.0
    %103 = vmatpush1.msra.mxu0 0.0
    %104 = vmatprep.subr.mxu0 0.0
    %105 = vmatpush1.msra.mxu0 0.0
    %106 = vmatprep.subr.mxu0 0.0
    %107 = vmatpush1.msra.mxu0 0.0
    %108 = vmatprep.subr.mxu0 0.0
    %109 = vmatpush1.msra.mxu0 0.0
    %110 = vmatprep.subr.mxu0 0.0
    %111 = vmatpush1.msra.mxu0 0.0
    %112 = vmatprep.subr.mxu0 0.0
    %113 = vmatpush1.msra.mxu0 0.0
    %114 = vmatprep.subr.mxu0 0.0
    %115 = vmatpush1.msra.mxu0 0.0
    %116 = vmatprep.subr.mxu0 0.0
    %117 = vmatpush1.msra.mxu0 0.0
    %118 = vmatprep.subr.mxu0 0.0
    %119 = vmatpush1.msra.mxu0 %v82
    %120 = vmatprep.subr.mxu0 0.0
    %121 = vmatpush1.msra.mxu0 %v81
    %122 = vmatprep.subr.mxu0 0.0
    %123 = vmatpush1.msra.mxu0 %v80
    %124 = vmatprep.subr.mxu0 0.0
    %125 = vmatpush1.msra.mxu0 %v79
    %126 = vmatprep.subr.mxu0 0.0
    %127 = vmatpush2.msra.mxu0 0.0
    %128 = vmatprep.subr.mxu0 0.0
    %129 = vmatpush2.msra.mxu0 0.0
    %130 = vmatprep.subr.mxu0 0.0
    %131 = vmatpush2.msra.mxu0 0.0
    %132 = vmatprep.subr.mxu0 0.0
    %133 = vmatpush2.msra.mxu0 0.0
    %134 = vmatprep.subr.mxu0 0.0
    %135 = vmatpush2.msra.mxu0 0.0
    %136 = vmatprep.subr.mxu0 0.0
    %137 = vmatpush2.msra.mxu0 0.0
    %138 = vmatprep.subr.mxu0 0.0
    %139 = vmatpush2.msra.mxu0 0.0
    %140 = vmatprep.subr.mxu0 0.0
    %141 = vmatpush2.msra.mxu0 0.0
    %142 = vmatprep.subr.mxu0 0.0
    %143 = vmatpush2.msra.mxu0 0.0
    %144 = vmatprep.subr.mxu0 0.0
    %145 = vmatpush2.msra.mxu0 0.0
    %146 = vmatprep.subr.mxu0 0.0
    %147 = vmatpush2.msra.mxu0 0.0
    %148 = vmatprep.subr.mxu0 0.0
    %149 = vmatpush2.msra.mxu0 0.0
    %150 = vmatprep.subr.mxu0 0.0
    %151 = vmatpush2.msra.mxu0 0.0
    %152 = vmatprep.subr.mxu0 0.0
    %153 = vmatpush2.msra.mxu0 0.0
    %154 = vmatprep.subr.mxu0 0.0
    %155 = vmatpush2.msra.mxu0 0.0
    %156 = vmatprep.subr.mxu0 0.0
    %157 = vmatpush2.msra.mxu0 0.0
    %158 = vmatprep.mubr.f32.mxu0 0.0
    %159 = vmatmul.mubr.f32.gmra.mxu0 %v92
    %v160 = vpop.f32.mrf.mxu0
    %v161 = vadd.f32 %v88, %v160
    %v162 = vpop.f32.mrf.mxu0
    %163 = vdwg.mxu0
    %v164 = vld [vmem:[#allocation7] sm:$0xff]
    %v165 = vld [vmem:[#allocation7 + $0x8] sm:$0xff]
    %v166 = vld [vmem:[#allocation7 + $0x10] sm:$0xff]
    %v167 = vld [vmem:[#allocation7 + $0x18] sm:$0xff]
    %v168 = vld [vmem:[#allocation8] sm:$0x1]
    %v170 = vlaneseq
    %v171 = vshrl.u32 %v170, 7
    %v172 = vsub.s32 0, %v171
    %v173 = vrot.slane %v168, %v172
    %175 = vmatprep.subr.mxu0 0.0
    %176 = vmatpush1.msra.mxu0 0.0
    %177 = vmatprep.subr.mxu0 0.0
    %178 = vmatpush1.msra.mxu0 0.0
    %179 = vmatprep.subr.mxu0 0.0
    %180 = vmatpush1.msra.mxu0 0.0
    %181 = vmatprep.subr.mxu0 0.0
    %182 = vmatpush1.msra.mxu0 0.0
    %183 = vmatprep.subr.mxu0 0.0
    %184 = vmatpush1.msra.mxu0 0.0
    %185 = vmatprep.subr.mxu0 0.0
    %186 = vmatpush1.msra.mxu0 0.0
    %187 = vmatprep.subr.mxu0 0.0
    %188 = vmatpush1.msra.mxu0 0.0
    %189 = vmatprep.subr.mxu0 0.0
    %190 = vmatpush1.msra.mxu0 0.0
    %191 = vmatprep.subr.mxu0 0.0
    %192 = vmatpush1.msra.mxu0 0.0
    %193 = vmatprep.subr.mxu0 0.0
    %194 = vmatpush1.msra.mxu0 0.0
    %195 = vmatprep.subr.mxu0 0.0
    %196 = vmatpush1.msra.mxu0 0.0
    %197 = vmatprep.subr.mxu0 0.0
    %198 = vmatpush1.msra.mxu0 0.0
    %199 = vmatprep.subr.mxu0 0.0
    %200 = vmatpush1.msra.mxu0 %v167
    %201 = vmatprep.subr.mxu0 0.0
    %202 = vmatpush1.msra.mxu0 %v166
    %203 = vmatprep.subr.mxu0 0.0
    %204 = vmatpush1.msra.mxu0 %v165
    %205 = vmatprep.subr.mxu0 0.0
    %206 = vmatpush1.msra.mxu0 %v164
    %207 = vmatprep.subr.mxu0 0.0
    %208 = vmatpush2.msra.mxu0 0.0
    %209 = vmatprep.subr.mxu0 0.0
    %210 = vmatpush2.msra.mxu0 0.0
    %211 = vmatprep.subr.mxu0 0.0
    %212 = vmatpush2.msra.mxu0 0.0
    %213 = vmatprep.subr.mxu0 0.0
    %214 = vmatpush2.msra.mxu0 0.0
    %215 = vmatprep.subr.mxu0 0.0
    %216 = vmatpush2.msra.mxu0 0.0
    %217 = vmatprep.subr.mxu0 0.0
    %218 = vmatpush2.msra.mxu0 0.0
    %219 = vmatprep.subr.mxu0 0.0
    %220 = vmatpush2.msra.mxu0 0.0
    %221 = vmatprep.subr.mxu0 0.0
    %222 = vmatpush2.msra.mxu0 0.0
    %223 = vmatprep.subr.mxu0 0.0
    %224 = vmatpush2.msra.mxu0 0.0
    %225 = vmatprep.subr.mxu0 0.0
    %226 = vmatpush2.msra.mxu0 0.0
    %227 = vmatprep.subr.mxu0 0.0
    %228 = vmatpush2.msra.mxu0 0.0
    %229 = vmatprep.subr.mxu0 0.0
    %230 = vmatpush2.msra.mxu0 0.0
    %231 = vmatprep.subr.mxu0 0.0
    %232 = vmatpush2.msra.mxu0 0.0
    %233 = vmatprep.subr.mxu0 0.0
    %234 = vmatpush2.msra.mxu0 0.0
    %235 = vmatprep.subr.mxu0 0.0
    %236 = vmatpush2.msra.mxu0 0.0
    %237 = vmatprep.subr.mxu0 0.0
    %238 = vmatpush2.msra.mxu0 0.0
    %239 = vmatprep.mubr.f32.mxu0 0.0
    %240 = vmatmul.mubr.f32.gmra.mxu0 %v92
    %v241 = vpop.f32.mrf.mxu0
    %v242 = vadd.f32 %v173, %v241
    %v243 = vpop.f32.mrf.mxu0
    %244 = vdwg.mxu0
    %v245 = vxor.u32 %v242, 2147483648
    %v246 = vmul.f32 %v245, 1.442695
    %v247 = vpow.pop %v246
    %v248 = vadd.f32 %v247, 1.0
    %v249 = vrcp.pop %v248
    %v250 = vmul.f32 1.0, %v249
    %v251 = vmul.f32 %v161, %v250
    %v252 = vmul.f32 %v251, 0.5
    %v253 = vmul.f32 %v252, 1.442695
    %v254 = vpow.pop %v253
    %v255 = vld [vmem:[%s5] sm:$0xff]
    %257 = vrot.lane.b32.xlu0 %v254, 112
    %v258 = vpop.permute.xlu0 %257
    %v260 = vmul.f32 %v255, %v258
    %v261 = vadd.f32 %v260, %v251
    %262 = vst.msk [vmem:[#allocation11] sm:$0xff] %vm90, %v251
    %vm263 = vcmask 130048
    %264 = vst.msk [vmem:[#allocation10] sm:$0xff] %vm263, %v261
    // Predicated region
    $region42: #{tpu_custom_call.1} parent=1 // pred_check
      _
    $region43: #{tpu_custom_call.1} parent=1 // pred_check_branch
      %266 = sbr.rel (0) target = $region45
    $region44: #{tpu_custom_call.1} parent=1 // pred_region
      %s268 = ssub.s32 128, 128
      %269 = vsyncadd [#allocation4], %s268
      %s271 = sshll.u32 [#allocation10], 4
      %s272 = int_to_ptr.vmem [resolvable:$true] %s271
      %274 = dma.vmem_to_hbm [thread:$0]  %s272, 128, %s6, [#allocation4]
    $region45: #{tpu_custom_call.1} parent=1 // pred_fallthru
      _
    // Predicated region
    $region46: #{tpu_custom_call.1} parent=1 // pred_check
      _
    $region47: #{tpu_custom_call.1} parent=1 // pred_check_branch
      %276 = sbr.rel (0) target = $region49
    $region48: #{tpu_custom_call.1} parent=1 // pred_region
      %s278 = ssub.s32 128, 128
      %279 = vsyncadd [#allocation12], %s278
      %s281 = sshll.u32 [#allocation11], 4
      %s282 = int_to_ptr.vmem [resolvable:$true] %s281
      %284 = dma.vmem_to_hbm [thread:$0]  %s282, 128, %s7, [#allocation12]
    $region49: #{tpu_custom_call.1} parent=1 // pred_fallthru
      _
    // Predicated region
    $region50: #{tpu_custom_call.1} parent=1 // pred_check
      _
    $region51: #{tpu_custom_call.1} parent=1 // pred_check_branch
      %286 = sbr.rel (0) target = $region53
    $region52: #{tpu_custom_call.1} parent=1 // pred_region
      %287 = dma.done [#allocation4], 128
    $region53: #{tpu_custom_call.1} parent=1 // pred_fallthru
      _
    // Predicated region
    $region54: #{tpu_custom_call.1} parent=1 // pred_check
      _
    $region55: #{tpu_custom_call.1} parent=1 // pred_check_branch
      %289 = sbr.rel (0) target = $region57
    $region56: #{tpu_custom_call.1} parent=1 // pred_region
      %290 = dma.done [#allocation12], 128
    $region57: #{tpu_custom_call.1} parent=1 // pred_fallthru
      _
    %291 = vsyncpa [#allocation3], 1
    %292 = vsyncpa [#allocation6], 1
    %293 = vsyncpa [#allocation9], 1
    %294 = vsyncpa [#allocation4], 1
    %295 = vsyncpa [#allocation12], 1

</llo_original>
